<compile_context>
chip_gen: v7x
topology: tpu7x:2x2x1
jax: 0.10.0
libtpu: 0.0.40
codegen_flags: <defaults>
</compile_context>

<pallas_src>
import functools
import math

import jax
import jax.numpy as jnp
from jax.experimental import pallas as pl
from jax.experimental.pallas import tpu as pltpu


# ----------------------------------------------------------------------------
# Glue: deterministic operator construction (filter, filtering operator,
# bilinear sampling matrix).
# ----------------------------------------------------------------------------
def _make_low_pass_filter(image_size, slice_thickness_ratio, fwhm):
    x = jnp.linspace(-1.0, 1.0, image_size, dtype=jnp.float32)
    xx, yy = jnp.meshgrid(x, x, indexing="ij")
    radius = jnp.sqrt(xx ** 2 + yy ** 2)
    r = radius / slice_thickness_ratio
    r_safe = jnp.where(radius == 0, 1.0, r)
    sinc_filter = jnp.where(radius == 0, 1.0, jnp.sin(r_safe) / r_safe)
    gaussian_filter = jnp.exp(-0.5 * (radius / fwhm) ** 2)
    return (sinc_filter * gaussian_filter).astype(jnp.float32)


@functools.lru_cache(maxsize=8)
def _make_filter_operator_T(image_size, slice_thickness_ratio, fwhm):
    """(HW, HW) real matrix L^T such that for a real (H, W) slice v:
         real(ifft2(fft2(v) * ifftshift(filter))).flatten() == v.flatten() @ L^T

    fftshift(spec)*filter -> ifftshift folds to spec * ifftshift(filter); torch's
    all-dim fftshift/ifftshift over the leading (C, D) axes cancels because the
    filter is constant there.  Built by applying the (linear) filtering op to the
    pixel basis; depends only on module config, so it is cached like a parameter.
    """
    H = W = image_size
    HW = H * W
    filt = _make_low_pass_filter(image_size, slice_thickness_ratio, fwhm)
    k_shifted = jnp.fft.ifftshift(filt)
    basis = jnp.eye(HW, dtype=jnp.float32).reshape(HW, H, W)
    resp = jnp.fft.ifft2(jnp.fft.fft2(basis) * k_shifted).real
    # resp[j].flatten() = L[:, j]  ->  resp.reshape(HW, HW) == L^T
    return resp.reshape(HW, HW).astype(jnp.float32)


def _make_sampling_matrix_T(H, W, angle_deg, tx, ty):
    """(HW, HW) matrix M^T (built already transposed, scatter-free) replicating
    F.affine_grid + F.grid_sample (bilinear, padding_mode='zeros',
    align_corners=False) for one (H, W) slice:  warped_flat == x_flat @ M^T.
    The z-row of the 3-D affine is the identity, so slices are independent."""
    a = jnp.float32(angle_deg * (math.pi / 180.0))
    cos_a, sin_a = jnp.cos(a), jnp.sin(a)
    hh = jnp.arange(H, dtype=jnp.float32)
    ww = jnp.arange(W, dtype=jnp.float32)
    y_out = (2.0 * hh + 1.0) / H - 1.0            # normalized output pixel centers
    x_out = (2.0 * ww + 1.0) / W - 1.0
    xg, yg = jnp.meshgrid(x_out, y_out, indexing="xy")    # (H, W): xg[h,w] = x_out[w]

    gx = cos_a * xg - sin_a * yg + tx             # affine_grid row 0
    gy = sin_a * xg + cos_a * yg + ty             # affine_grid row 1
    ix = ((gx + 1.0) * W - 1.0) / 2.0             # unnormalize (align_corners=False)
    iy = ((gy + 1.0) * H - 1.0) / 2.0

    x0 = jnp.floor(ix)
    y0 = jnp.floor(iy)
    x1 = x0 + 1.0
    y1 = y0 + 1.0
    wx1 = ix - x0
    wx0 = 1.0 - wx1
    wy1 = iy - y0
    wy0 = 1.0 - wy1

    HW = H * W
    in_idx_taps = []
    wgt_taps = []
    for yc, xc, wgt in ((y0, x0, wy0 * wx0), (y0, x1, wy0 * wx1),
                        (y1, x0, wy1 * wx0), (y1, x1, wy1 * wx1)):
        yi = yc.astype(jnp.int32)
        xi = xc.astype(jnp.int32)
        valid = (yi >= 0) & (yi < H) & (xi >= 0) & (xi < W)
        in_idx_taps.append(jnp.where(valid, yi * W + xi, 0).reshape(-1))
        wgt_taps.append(jnp.where(valid, wgt, 0.0).reshape(-1).astype(jnp.float32))

    in_idx = jnp.stack(in_idx_taps)               # (4, HW) input pixel per output pixel
    wgt = jnp.stack(wgt_taps)                     # (4, HW) bilinear weight
    onehot = jax.nn.one_hot(in_idx, HW, dtype=jnp.float32)   # (4, HW_out, HW_in)
    # M[o, i] = sum_t onehot[t, o, i] * wgt[t, o]   ->  M^T[i, o]
    return jnp.einsum("toi,to->io", onehot, wgt)


# ----------------------------------------------------------------------------
# Pallas kernel (hot path): fused resample + spectral low-pass.
# ----------------------------------------------------------------------------
def _degrade_kernel(x_ref, mT_ref, lT_ref, o_ref):
    # Stage 1 (rigid bilinear resample) and Stage 2 (fft2 -> fftshift -> filter
    # -> ifftshift -> ifft2 -> real) fused as two lane-dense MXU matmuls.  The
    # (tb, HW) f32 intermediate stays implicit (few vregs at the tested size).
    t = jnp.dot(x_ref[...], mT_ref[...], preferred_element_type=jnp.float32)
    o_ref[...] = jnp.dot(t, lT_ref[...], preferred_element_type=jnp.float32)


# ----------------------------------------------------------------------------
# Wrapper = DegradationNetwork.forward
# ----------------------------------------------------------------------------
def degradation_forward(x, angle, translation, *, slice_thickness_ratio=0.5, fwhm=1.0):
    C, D, H, W = x.shape
    assert H == W, "image_size must match both spatial dims"
    B, HW = C * D, H * W

    tx, ty = translation
    mT = _make_sampling_matrix_T(H, W, angle, tx, ty)                           # per-call
    lT = _make_filter_operator_T(H, float(slice_thickness_ratio), float(fwhm))  # cached

    x_flat = x.reshape(B, HW).astype(jnp.float32)

    cost = pl.CostEstimate(flops=4 * B * HW * HW,
                           transcendentals=0,
                           bytes_accessed=4 * (2 * B * HW + 2 * HW * HW))

    # VMEM footprint of a single ungridded call: x, out, intermediate, mT, lT.
    single_shot_bytes = 4 * (3 * B * HW + 2 * HW * HW)

    if single_shot_bytes <= 12 * 1024 * 1024 or B % 8 != 0:
        # Primary path (covers the tested sizes): one launch, whole arrays in
        # VMEM, no grid, no double-buffering of the grid-invariant operators,
        # no megacore split (the kernel is launch/DMA bound at this size).
        y_flat = pl.pallas_call(
            _degrade_kernel,
            out_shape=jax.ShapeDtypeStruct((B, HW), jnp.float32),
            cost_estimate=cost,
        )(x_flat, mT, lT)
    else:
        # Large-B fallback: batch tiles that fill the MXU rows (up to 256,
        # always a multiple of 8 sublanes); operators keep a constant block
        # index so they are fetched once.  Axis is "arbitrary" so each
        # operator is not re-fetched per TensorCore on v7x.
        tb = 8
        for cand in (256, 128, 64, 32, 16, 8):
            if B % cand == 0:
                tb = cand
                break
        nb = B // tb
        y_flat = pl.pallas_call(
            _degrade_kernel,
            out_shape=jax.ShapeDtypeStruct((B, HW), jnp.float32),
            grid=(nb,),
            in_specs=[pl.BlockSpec((tb, HW), lambda i: (i, 0)),
                      pl.BlockSpec((HW, HW), lambda i: (0, 0)),
                      pl.BlockSpec((HW, HW), lambda i: (0, 0))],
            out_specs=pl.BlockSpec((tb, HW), lambda i: (i, 0)),
            compiler_params=pltpu.CompilerParams(
                dimension_semantics=("arbitrary",)),
            cost_estimate=cost,
        )(x_flat, mT, lT)

    return y_flat.reshape(C, D, H, W)


# ----------------------------------------------------------------------------
# Pure-JAX reference (sanity check only).
# ----------------------------------------------------------------------------
def _reference(x, angle, translation, slice_thickness_ratio, fwhm):
    C, D, H, W = x.shape
    mT = _make_sampling_matrix_T(H, W, angle, translation[0], translation[1])
    t = (x.reshape(C * D, H * W) @ mT).reshape(C, D, H, W)
    filt = _make_low_pass_filter(H, slice_thickness_ratio, fwhm)
    # torch's all-dim fftshift/ifftshift over C,D cancels (filter constant there),
    # so shifting only the spatial axes here is equivalent.
    freq = jnp.fft.fftshift(jnp.fft.fft2(t), axes=(-2, -1)) * filt
    return jnp.fft.ifft2(jnp.fft.ifftshift(freq, axes=(-2, -1))).real


if __name__ == "__main__":
    key = jax.random.PRNGKey(0)
    C, D, H, W = 2, 8, 16, 16            # x: (C, D, H, W), image_size = 16
    x = jax.random.normal(key, (C, D, H, W), dtype=jnp.float32)
    angle = 15.0                         # degrees
    translation = (0.1, -0.05)

    y = degradation_forward(x, angle, translation,
                            slice_thickness_ratio=0.5, fwhm=1.0)
    y = jax.block_until_ready(y)

    y_ref = _reference(x, angle, translation, 0.5, 1.0)
    assert y.shape == (C, D, H, W)
    max_err = float(jnp.max(jnp.abs(y - y_ref)))
    assert max_err < 1e-3, f"max abs error {max_err}"
    print("KERNEL_OK")
</pallas_src>

<mosaic_0001>
module attributes {stable_mosaic.version = 11 : i64} {
  func.func @_degrade_kernel(%arg0: memref<16x256xf32, #tpu.memory_space<vmem>>, %arg1: memref<256x256xf32, #tpu.memory_space<vmem>>, %arg2: memref<256x256xf32, #tpu.memory_space<vmem>>, %arg3: memref<16x256xf32, #tpu.memory_space<vmem>>) attributes {dimension_semantics = [], scalar_prefetch = 0 : i64, scratch_operands = 0 : i64, tpu.core_type = #tpu.core_type<tc>} {
    %c0 = arith.constant 0 : index
    %c0_0 = arith.constant 0 : index
    %0 = vector.load %arg0[%c0, %c0_0] : memref<16x256xf32, #tpu.memory_space<vmem>>, vector<16x256xf32>
    %c0_1 = arith.constant 0 : index
    %c0_2 = arith.constant 0 : index
    %1 = vector.load %arg1[%c0_1, %c0_2] : memref<256x256xf32, #tpu.memory_space<vmem>>, vector<256x256xf32>
    %cst = arith.constant dense<0.000000e+00> : vector<16x256xf32>
    %2 = tpu.matmul %0, %1, %cst {dimension_numbers = #tpu.dot_dimension_numbers<[1], [0], [0], [1], [0, 0, 1, 1], [], []>} : vector<16x256xf32>, vector<256x256xf32>, vector<16x256xf32> -> vector<16x256xf32>
    %c0_3 = arith.constant 0 : index
    %c0_4 = arith.constant 0 : index
    %3 = vector.load %arg2[%c0_3, %c0_4] : memref<256x256xf32, #tpu.memory_space<vmem>>, vector<256x256xf32>
    %cst_5 = arith.constant dense<0.000000e+00> : vector<16x256xf32>
    %4 = tpu.matmul %2, %3, %cst_5 {dimension_numbers = #tpu.dot_dimension_numbers<[1], [0], [0], [1], [0, 0, 1, 1], [], []>} : vector<16x256xf32>, vector<256x256xf32>, vector<16x256xf32> -> vector<16x256xf32>
    %c0_6 = arith.constant 0 : index
    %c0_7 = arith.constant 0 : index
    %5 = vector.load %arg3[%c0_6, %c0_7] : memref<16x256xf32, #tpu.memory_space<vmem>>, vector<16x256xf32>
    tpu.vector_store %arg3[%c0_6, %c0_7], %4 {strides = array<i32>} : memref<16x256xf32, #tpu.memory_space<vmem>>, vector<16x256xf32>,
    return
  }
}

</mosaic_0001>

<llo_original>
// kernel: tpu_custom_call.1
$region0: #{tpu_custom_call.1}
  #allocation0 [shape = 'u32[]', space=smem, size = 0x4, offset = 0x4, fixed_abs, tag = 'smem constant byte address 0x4 - core index']
  #allocation1 [shape = 'u32[144,128]{1,0:T(1,128)}', space=vmem, size = 0x12000, scoped, tag = 'internal scratch']
  %s0 = inlined_call_operand.hbm [shape: f32[16,256], index: 0, kind: input, shape index: {}]
  %s1 = inlined_call_operand.hbm [shape: f32[256,256], index: 1, kind: input, shape index: {}]
  %s2 = inlined_call_operand.hbm [shape: f32[256,256], index: 2, kind: input, shape index: {}]
  %s3 = inlined_call_operand.hbm [shape: f32[16,256], index: 3, kind: output, shape index: {}]
  %s4 = sld [smem:[#allocation0]]
  $region34: #{tpu_custom_call.1} parent=0
    _
  %s6 = ssub.s32 1, %s4
  %s7 = scalar_select 0, %s6, %s4
  $region1: #{tpu_custom_call.1} parent=0
    #allocation2 [shape = 'u8[16384]{0}', space=vmem, size = 0x4000, scoped, tag = 'input window, operand 0, single buffered']
    #allocation3 [shape = 's32[1]{0}', space=sflag, size = 0x4, scoped, tag = 'scoped memory for tpu_custom_call.1']
    #allocation4 [shape = 's32[1]{0}', space=sflag, size = 0x4, scoped, tag = 'scoped memory for tpu_custom_call.1']
    #allocation5 [shape = 'u8[262144]{0}', space=vmem, size = 0x40000, scoped, tag = 'input window, operand 1, single buffered']
    #allocation6 [shape = 's32[1]{0}', space=sflag, size = 0x4, scoped, tag = 'scoped memory for tpu_custom_call.1']
    #allocation7 [shape = 'u8[262144]{0}', space=vmem, size = 0x40000, scoped, tag = 'input window, operand 2, single buffered']
    #allocation8 [shape = 'u8[16384]{0}', space=vmem, size = 0x4000, scoped, tag = 'output window, operand 0, single buffered']
    %8 = vsyncpa [#allocation3], 0
    %9 = vsyncpa [#allocation6], 0
    %10 = vsyncpa [#allocation4], 0
    // Predicated region
    $region2: #{tpu_custom_call.1} parent=1 // pred_check
      _
    $region3: #{tpu_custom_call.1} parent=1 // pred_check_branch
      %12 = sbr.rel (0) target = $region5
    $region4: #{tpu_custom_call.1} parent=1 // pred_region
      %s14 = ssub.s32 512, 512
      %15 = vsyncadd [#allocation3], %s14
      %s16 = sshll.u32 [#allocation2], 4
      %s17 = int_to_ptr.vmem [resolvable:$true] %s16
      %22 = dma.hbm_to_vmem [thread:$0]  %s0, 512, %s17, [#allocation3], 256, 256, 16
    $region5: #{tpu_custom_call.1} parent=1 // pred_fallthru
      _
    // Predicated region
    $region6: #{tpu_custom_call.1} parent=1 // pred_check
      _
    $region7: #{tpu_custom_call.1} parent=1 // pred_check_branch
      %24 = sbr.rel (0) target = $region9
    $region8: #{tpu_custom_call.1} parent=1 // pred_region
      %s26 = ssub.s32 8192, 8192
      %27 = vsyncadd [#allocation6], %s26
      %s28 = sshll.u32 [#allocation5], 4
      %s29 = int_to_ptr.vmem [resolvable:$true] %s28
      %34 = dma.hbm_to_vmem [thread:$0]  %s1, 8192, %s29, [#allocation6], 256, 256, 16
    $region9: #{tpu_custom_call.1} parent=1 // pred_fallthru
      _
    // Predicated region
    $region10: #{tpu_custom_call.1} parent=1 // pred_check
      _
    $region11: #{tpu_custom_call.1} parent=1 // pred_check_branch
      %36 = sbr.rel (0) target = $region13
    $region12: #{tpu_custom_call.1} parent=1 // pred_region
      %s38 = ssub.s32 8192, 8192
      %39 = vsyncadd [#allocation6], %s38
      %s40 = sshll.u32 [#allocation7], 4
      %s41 = int_to_ptr.vmem [resolvable:$true] %s40
      %46 = dma.hbm_to_vmem [thread:$0]  %s2, 8192, %s41, [#allocation6], 256, 256, 16
    $region13: #{tpu_custom_call.1} parent=1 // pred_fallthru
      _
    // Predicated region
    $region14: #{tpu_custom_call.1} parent=1 // pred_check
      _
    $region15: #{tpu_custom_call.1} parent=1 // pred_check_branch
      %48 = sbr.rel (0) target = $region17
    $region16: #{tpu_custom_call.1} parent=1 // pred_region
      %49 = dma.done [#allocation3], 512
    $region17: #{tpu_custom_call.1} parent=1 // pred_fallthru
      _
    // Predicated region
    $region18: #{tpu_custom_call.1} parent=1 // pred_check
      _
    $region19: #{tpu_custom_call.1} parent=1 // pred_check_branch
      %51 = sbr.rel (0) target = $region21
    $region20: #{tpu_custom_call.1} parent=1 // pred_region
      %52 = dma.done [#allocation6], 8192
    $region21: #{tpu_custom_call.1} parent=1 // pred_fallthru
      _
    // Predicated region
    $region22: #{tpu_custom_call.1} parent=1 // pred_check
      _
    $region23: #{tpu_custom_call.1} parent=1 // pred_check_branch
      %54 = sbr.rel (0) target = $region25
    $region24: #{tpu_custom_call.1} parent=1 // pred_region
      %55 = dma.done [#allocation6], 8192
    $region25: #{tpu_custom_call.1} parent=1 // pred_fallthru
      _
    %v56 = vld [vmem:[#allocation2] sm:$0xff]
    %v57 = vld [vmem:[#allocation2 + $0x8] sm:$0xff]
    %v58 = vld [vmem:[#allocation2 + $0x10] sm:$0xff]
    %v59 = vld [vmem:[#allocation2 + $0x18] sm:$0xff]
    %v60 = vld [vmem:[#allocation5] sm:$0xff]
    %v61 = vld [vmem:[#allocation5 + $0x8] sm:$0xff]
    %v62 = vld [vmem:[#allocation5 + $0x10] sm:$0xff]
    %v63 = vld [vmem:[#allocation5 + $0x18] sm:$0xff]
    %v64 = vld [vmem:[#allocation5 + $0x20] sm:$0xff]
    %v65 = vld [vmem:[#allocation5 + $0x28] sm:$0xff]
    %v66 = vld [vmem:[#allocation5 + $0x30] sm:$0xff]
    %v67 = vld [vmem:[#allocation5 + $0x38] sm:$0xff]
    %v68 = vld [vmem:[#allocation5 + $0x40] sm:$0xff]
    %v69 = vld [vmem:[#allocation5 + $0x48] sm:$0xff]
    %v70 = vld [vmem:[#allocation5 + $0x50] sm:$0xff]
    %v71 = vld [vmem:[#allocation5 + $0x58] sm:$0xff]
    %v72 = vld [vmem:[#allocation5 + $0x60] sm:$0xff]
    %v73 = vld [vmem:[#allocation5 + $0x68] sm:$0xff]
    %v74 = vld [vmem:[#allocation5 + $0x70] sm:$0xff]
    %v75 = vld [vmem:[#allocation5 + $0x78] sm:$0xff]
    %v76 = vld [vmem:[#allocation5 + $0x80] sm:$0xff]
    %v77 = vld [vmem:[#allocation5 + $0x88] sm:$0xff]
    %v78 = vld [vmem:[#allocation5 + $0x90] sm:$0xff]
    %v79 = vld [vmem:[#allocation5 + $0x98] sm:$0xff]
    %v80 = vld [vmem:[#allocation5 + $0xa0] sm:$0xff]
    %v81 = vld [vmem:[#allocation5 + $0xa8] sm:$0xff]
    %v82 = vld [vmem:[#allocation5 + $0xb0] sm:$0xff]
    %v83 = vld [vmem:[#allocation5 + $0xb8] sm:$0xff]
    %v84 = vld [vmem:[#allocation5 + $0xc0] sm:$0xff]
    %v85 = vld [vmem:[#allocation5 + $0xc8] sm:$0xff]
    %v86 = vld [vmem:[#allocation5 + $0xd0] sm:$0xff]
    %v87 = vld [vmem:[#allocation5 + $0xd8] sm:$0xff]
    %v88 = vld [vmem:[#allocation5 + $0xe0] sm:$0xff]
    %v89 = vld [vmem:[#allocation5 + $0xe8] sm:$0xff]
    %v90 = vld [vmem:[#allocation5 + $0xf0] sm:$0xff]
    %v91 = vld [vmem:[#allocation5 + $0xf8] sm:$0xff]
    %v92 = vld [vmem:[#allocation5 + $0x100] sm:$0xff]
    %v93 = vld [vmem:[#allocation5 + $0x108] sm:$0xff]
    %v94 = vld [vmem:[#allocation5 + $0x110] sm:$0xff]
    %v95 = vld [vmem:[#allocation5 + $0x118] sm:$0xff]
    %v96 = vld [vmem:[#allocation5 + $0x120] sm:$0xff]
    %v97 = vld [vmem:[#allocation5 + $0x128] sm:$0xff]
    %v98 = vld [vmem:[#allocation5 + $0x130] sm:$0xff]
    %v99 = vld [vmem:[#allocation5 + $0x138] sm:$0xff]
    %v100 = vld [vmem:[#allocation5 + $0x140] sm:$0xff]
    %v101 = vld [vmem:[#allocation5 + $0x148] sm:$0xff]
    %v102 = vld [vmem:[#allocation5 + $0x150] sm:$0xff]
    %v103 = vld [vmem:[#allocation5 + $0x158] sm:$0xff]
    %v104 = vld [vmem:[#allocation5 + $0x160] sm:$0xff]
    %v105 = vld [vmem:[#allocation5 + $0x168] sm:$0xff]
    %v106 = vld [vmem:[#allocation5 + $0x170] sm:$0xff]
    %v107 = vld [vmem:[#allocation5 + $0x178] sm:$0xff]
    %v108 = vld [vmem:[#allocation5 + $0x180] sm:$0xff]
    %v109 = vld [vmem:[#allocation5 + $0x188] sm:$0xff]
    %v110 = vld [vmem:[#allocation5 + $0x190] sm:$0xff]
    %v111 = vld [vmem:[#allocation5 + $0x198] sm:$0xff]
    %v112 = vld [vmem:[#allocation5 + $0x1a0] sm:$0xff]
    %v113 = vld [vmem:[#allocation5 + $0x1a8] sm:$0xff]
    %v114 = vld [vmem:[#allocation5 + $0x1b0] sm:$0xff]
    %v115 = vld [vmem:[#allocation5 + $0x1b8] sm:$0xff]
    %v116 = vld [vmem:[#allocation5 + $0x1c0] sm:$0xff]
    %v117 = vld [vmem:[#allocation5 + $0x1c8] sm:$0xff]
    %v118 = vld [vmem:[#allocation5 + $0x1d0] sm:$0xff]
    %v119 = vld [vmem:[#allocation5 + $0x1d8] sm:$0xff]
    %v120 = vld [vmem:[#allocation5 + $0x1e0] sm:$0xff]
    %v121 = vld [vmem:[#allocation5 + $0x1e8] sm:$0xff]
    %v122 = vld [vmem:[#allocation5 + $0x1f0] sm:$0xff]
    %v123 = vld [vmem:[#allocation5 + $0x1f8] sm:$0xff]
    %124 = vmatprep.subr.mxu0 %v61
    %125 = vmatpush1.msra.mxu0 %v60
    %126 = vmatprep.subr.mxu0 %v63
    %127 = vmatpush1.msra.mxu0 %v62
    %128 = vmatprep.subr.mxu0 %v65
    %129 = vmatpush1.msra.mxu0 %v64
    %130 = vmatprep.subr.mxu0 %v67
    %131 = vmatpush1.msra.mxu0 %v66
    %132 = vmatprep.subr.mxu0 %v69
    %133 = vmatpush1.msra.mxu0 %v68
    %134 = vmatprep.subr.mxu0 %v71
    %135 = vmatpush1.msra.mxu0 %v70
    %136 = vmatprep.subr.mxu0 %v73
    %137 = vmatpush1.msra.mxu0 %v72
    %138 = vmatprep.subr.mxu0 %v75
    %139 = vmatpush1.msra.mxu0 %v74
    %140 = vmatprep.subr.mxu0 %v77
    %141 = vmatpush1.msra.mxu0 %v76
    %142 = vmatprep.subr.mxu0 %v79
    %143 = vmatpush1.msra.mxu0 %v78
    %144 = vmatprep.subr.mxu0 %v81
    %145 = vmatpush1.msra.mxu0 %v80
    %146 = vmatprep.subr.mxu0 %v83
    %147 = vmatpush1.msra.mxu0 %v82
    %148 = vmatprep.subr.mxu0 %v85
    %149 = vmatpush1.msra.mxu0 %v84
    %150 = vmatprep.subr.mxu0 %v87
    %151 = vmatpush1.msra.mxu0 %v86
    %152 = vmatprep.subr.mxu0 %v89
    %153 = vmatpush1.msra.mxu0 %v88
    %154 = vmatprep.subr.mxu0 %v91
    %155 = vmatpush1.msra.mxu0 %v90
    %156 = vmatprep.subr.mxu0 %v93
    %157 = vmatpush1.msra.mxu0 %v92
    %158 = vmatprep.subr.mxu0 %v95
    %159 = vmatpush1.msra.mxu0 %v94
    %160 = vmatprep.subr.mxu0 %v97
    %161 = vmatpush1.msra.mxu0 %v96
    %162 = vmatprep.subr.mxu0 %v99
    %163 = vmatpush1.msra.mxu0 %v98
    %164 = vmatprep.subr.mxu0 %v101
    %165 = vmatpush1.msra.mxu0 %v100
    %166 = vmatprep.subr.mxu0 %v103
    %167 = vmatpush1.msra.mxu0 %v102
    %168 = vmatprep.subr.mxu0 %v105
    %169 = vmatpush1.msra.mxu0 %v104
    %170 = vmatprep.subr.mxu0 %v107
    %171 = vmatpush1.msra.mxu0 %v106
    %172 = vmatprep.subr.mxu0 %v109
    %173 = vmatpush1.msra.mxu0 %v108
    %174 = vmatprep.subr.mxu0 %v111
    %175 = vmatpush1.msra.mxu0 %v110
    %176 = vmatprep.subr.mxu0 %v113
    %177 = vmatpush1.msra.mxu0 %v112
    %178 = vmatprep.subr.mxu0 %v115
    %179 = vmatpush1.msra.mxu0 %v114
    %180 = vmatprep.subr.mxu0 %v117
    %181 = vmatpush1.msra.mxu0 %v116
    %182 = vmatprep.subr.mxu0 %v119
    %183 = vmatpush1.msra.mxu0 %v118
    %184 = vmatprep.subr.mxu0 %v121
    %185 = vmatpush1.msra.mxu0 %v120
    %186 = vmatprep.subr.mxu0 %v123
    %187 = vmatpush1.msra.mxu0 %v122
    %188 = vmatprep.mubr.f32.mxu0 %v57
    %189 = vmatmul.mubr.f32.gmra.mrb[0].mxu0 %v56
    %v190 = vpop.f32.mrb[0].mxu0
    %v191 = vadd.f32 0.0, %v190
    %v192 = vpop.f32.mrb[0].mxu0
    %v193 = vadd.f32 0.0, %v192
    %194 = vmatprep.mubr.f32.mxu0 %v59
    %195 = vmatmul.mubr.f32.gmra.mrb[0].mxu0 %v58
    %v196 = vpop.f32.mrb[0].mxu0
    %v197 = vadd.f32 0.0, %v196
    %v198 = vpop.f32.mrb[0].mxu0
    %v199 = vadd.f32 0.0, %v198
    %200 = vdwg.mxu0
    %v201 = vld [vmem:[#allocation7] sm:$0xff]
    %v202 = vld [vmem:[#allocation7 + $0x8] sm:$0xff]
    %v203 = vld [vmem:[#allocation7 + $0x10] sm:$0xff]
    %v204 = vld [vmem:[#allocation7 + $0x18] sm:$0xff]
    %v205 = vld [vmem:[#allocation7 + $0x20] sm:$0xff]
    %v206 = vld [vmem:[#allocation7 + $0x28] sm:$0xff]
    %v207 = vld [vmem:[#allocation7 + $0x30] sm:$0xff]
    %v208 = vld [vmem:[#allocation7 + $0x38] sm:$0xff]
    %v209 = vld [vmem:[#allocation7 + $0x40] sm:$0xff]
    %v210 = vld [vmem:[#allocation7 + $0x48] sm:$0xff]
    %v211 = vld [vmem:[#allocation7 + $0x50] sm:$0xff]
    %v212 = vld [vmem:[#allocation7 + $0x58] sm:$0xff]
    %v213 = vld [vmem:[#allocation7 + $0x60] sm:$0xff]
    %v214 = vld [vmem:[#allocation7 + $0x68] sm:$0xff]
    %v215 = vld [vmem:[#allocation7 + $0x70] sm:$0xff]
    %v216 = vld [vmem:[#allocation7 + $0x78] sm:$0xff]
    %v217 = vld [vmem:[#allocation7 + $0x80] sm:$0xff]
    %v218 = vld [vmem:[#allocation7 + $0x88] sm:$0xff]
    %v219 = vld [vmem:[#allocation7 + $0x90] sm:$0xff]
    %v220 = vld [vmem:[#allocation7 + $0x98] sm:$0xff]
    %v221 = vld [vmem:[#allocation7 + $0xa0] sm:$0xff]
    %v222 = vld [vmem:[#allocation7 + $0xa8] sm:$0xff]
    %v223 = vld [vmem:[#allocation7 + $0xb0] sm:$0xff]
    %v224 = vld [vmem:[#allocation7 + $0xb8] sm:$0xff]
    %v225 = vld [vmem:[#allocation7 + $0xc0] sm:$0xff]
    %v226 = vld [vmem:[#allocation7 + $0xc8] sm:$0xff]
    %v227 = vld [vmem:[#allocation7 + $0xd0] sm:$0xff]
    %v228 = vld [vmem:[#allocation7 + $0xd8] sm:$0xff]
    %v229 = vld [vmem:[#allocation7 + $0xe0] sm:$0xff]
    %v230 = vld [vmem:[#allocation7 + $0xe8] sm:$0xff]
    %v231 = vld [vmem:[#allocation7 + $0xf0] sm:$0xff]
    %v232 = vld [vmem:[#allocation7 + $0xf8] sm:$0xff]
    %v233 = vld [vmem:[#allocation7 + $0x100] sm:$0xff]
    %v234 = vld [vmem:[#allocation7 + $0x108] sm:$0xff]
    %v235 = vld [vmem:[#allocation7 + $0x110] sm:$0xff]
    %v236 = vld [vmem:[#allocation7 + $0x118] sm:$0xff]
    %v237 = vld [vmem:[#allocation7 + $0x120] sm:$0xff]
    %v238 = vld [vmem:[#allocation7 + $0x128] sm:$0xff]
    %v239 = vld [vmem:[#allocation7 + $0x130] sm:$0xff]
    %v240 = vld [vmem:[#allocation7 + $0x138] sm:$0xff]
    %v241 = vld [vmem:[#allocation7 + $0x140] sm:$0xff]
    %v242 = vld [vmem:[#allocation7 + $0x148] sm:$0xff]
    %v243 = vld [vmem:[#allocation7 + $0x150] sm:$0xff]
    %v244 = vld [vmem:[#allocation7 + $0x158] sm:$0xff]
    %v245 = vld [vmem:[#allocation7 + $0x160] sm:$0xff]
    %v246 = vld [vmem:[#allocation7 + $0x168] sm:$0xff]
    %v247 = vld [vmem:[#allocation7 + $0x170] sm:$0xff]
    %v248 = vld [vmem:[#allocation7 + $0x178] sm:$0xff]
    %v249 = vld [vmem:[#allocation7 + $0x180] sm:$0xff]
    %v250 = vld [vmem:[#allocation7 + $0x188] sm:$0xff]
    %v251 = vld [vmem:[#allocation7 + $0x190] sm:$0xff]
    %v252 = vld [vmem:[#allocation7 + $0x198] sm:$0xff]
    %v253 = vld [vmem:[#allocation7 + $0x1a0] sm:$0xff]
    %v254 = vld [vmem:[#allocation7 + $0x1a8] sm:$0xff]
    %v255 = vld [vmem:[#allocation7 + $0x1b0] sm:$0xff]
    %v256 = vld [vmem:[#allocation7 + $0x1b8] sm:$0xff]
    %v257 = vld [vmem:[#allocation7 + $0x1c0] sm:$0xff]
    %v258 = vld [vmem:[#allocation7 + $0x1c8] sm:$0xff]
    %v259 = vld [vmem:[#allocation7 + $0x1d0] sm:$0xff]
    %v260 = vld [vmem:[#allocation7 + $0x1d8] sm:$0xff]
    %v261 = vld [vmem:[#allocation7 + $0x1e0] sm:$0xff]
    %v262 = vld [vmem:[#allocation7 + $0x1e8] sm:$0xff]
    %v263 = vld [vmem:[#allocation7 + $0x1f0] sm:$0xff]
    %v264 = vld [vmem:[#allocation7 + $0x1f8] sm:$0xff]
    %265 = vmatprep.subr.mxu0 %v202
    %266 = vmatpush1.msra.mxu0 %v201
    %267 = vmatprep.subr.mxu0 %v204
    %268 = vmatpush1.msra.mxu0 %v203
    %269 = vmatprep.subr.mxu0 %v206
    %270 = vmatpush1.msra.mxu0 %v205
    %271 = vmatprep.subr.mxu0 %v208
    %272 = vmatpush1.msra.mxu0 %v207
    %273 = vmatprep.subr.mxu0 %v210
    %274 = vmatpush1.msra.mxu0 %v209
    %275 = vmatprep.subr.mxu0 %v212
    %276 = vmatpush1.msra.mxu0 %v211
    %277 = vmatprep.subr.mxu0 %v214
    %278 = vmatpush1.msra.mxu0 %v213
    %279 = vmatprep.subr.mxu0 %v216
    %280 = vmatpush1.msra.mxu0 %v215
    %281 = vmatprep.subr.mxu0 %v218
    %282 = vmatpush1.msra.mxu0 %v217
    %283 = vmatprep.subr.mxu0 %v220
    %284 = vmatpush1.msra.mxu0 %v219
    %285 = vmatprep.subr.mxu0 %v222
    %286 = vmatpush1.msra.mxu0 %v221
    %287 = vmatprep.subr.mxu0 %v224
    %288 = vmatpush1.msra.mxu0 %v223
    %289 = vmatprep.subr.mxu0 %v226
    %290 = vmatpush1.msra.mxu0 %v225
    %291 = vmatprep.subr.mxu0 %v228
    %292 = vmatpush1.msra.mxu0 %v227
    %293 = vmatprep.subr.mxu0 %v230
    %294 = vmatpush1.msra.mxu0 %v229
    %295 = vmatprep.subr.mxu0 %v232
    %296 = vmatpush1.msra.mxu0 %v231
    %297 = vmatprep.subr.mxu0 %v234
    %298 = vmatpush1.msra.mxu0 %v233
    %299 = vmatprep.subr.mxu0 %v236
    %300 = vmatpush1.msra.mxu0 %v235
    %301 = vmatprep.subr.mxu0 %v238
    %302 = vmatpush1.msra.mxu0 %v237
    %303 = vmatprep.subr.mxu0 %v240
    %304 = vmatpush1.msra.mxu0 %v239
    %305 = vmatprep.subr.mxu0 %v242
    %306 = vmatpush1.msra.mxu0 %v241
    %307 = vmatprep.subr.mxu0 %v244
    %308 = vmatpush1.msra.mxu0 %v243
    %309 = vmatprep.subr.mxu0 %v246
    %310 = vmatpush1.msra.mxu0 %v245
    %311 = vmatprep.subr.mxu0 %v248
    %312 = vmatpush1.msra.mxu0 %v247
    %313 = vmatprep.subr.mxu0 %v250
    %314 = vmatpush1.msra.mxu0 %v249
    %315 = vmatprep.subr.mxu0 %v252
    %316 = vmatpush1.msra.mxu0 %v251
    %317 = vmatprep.subr.mxu0 %v254
    %318 = vmatpush1.msra.mxu0 %v253
    %319 = vmatprep.subr.mxu0 %v256
    %320 = vmatpush1.msra.mxu0 %v255
    %321 = vmatprep.subr.mxu0 %v258
    %322 = vmatpush1.msra.mxu0 %v257
    %323 = vmatprep.subr.mxu0 %v260
    %324 = vmatpush1.msra.mxu0 %v259
    %325 = vmatprep.subr.mxu0 %v262
    %326 = vmatpush1.msra.mxu0 %v261
    %327 = vmatprep.subr.mxu0 %v264
    %328 = vmatpush1.msra.mxu0 %v263
    %329 = vmatprep.mubr.f32.mxu0 %v193
    %330 = vmatmul.mubr.f32.gmra.mrb[0].mxu0 %v191
    %v331 = vpop.f32.mrb[0].mxu0
    %v332 = vadd.f32 0.0, %v331
    %v333 = vpop.f32.mrb[0].mxu0
    %v334 = vadd.f32 0.0, %v333
    %335 = vmatprep.mubr.f32.mxu0 %v199
    %336 = vmatmul.mubr.f32.gmra.mrb[0].mxu0 %v197
    %v337 = vpop.f32.mrb[0].mxu0
    %v338 = vadd.f32 0.0, %v337
    %v339 = vpop.f32.mrb[0].mxu0
    %v340 = vadd.f32 0.0, %v339
    %341 = vdwg.mxu0
    %342 = vst [vmem:[#allocation8] sm:$0xff] %v332
    %343 = vst [vmem:[#allocation8 + $0x8] sm:$0xff] %v334
    %344 = vst [vmem:[#allocation8 + $0x10] sm:$0xff] %v338
    %345 = vst [vmem:[#allocation8 + $0x18] sm:$0xff] %v340
    // Predicated region
    $region26: #{tpu_custom_call.1} parent=1 // pred_check
      _
    $region27: #{tpu_custom_call.1} parent=1 // pred_check_branch
      %347 = sbr.rel (0) target = $region29
    $region28: #{tpu_custom_call.1} parent=1 // pred_region
      %s349 = ssub.s32 512, 512
      %350 = vsyncadd [#allocation4], %s349
      %s351 = sshll.u32 [#allocation8], 4
      %s352 = int_to_ptr.vmem [resolvable:$true] %s351
      %357 = dma.vmem_to_hbm [thread:$0]  %s352, 512, %s3, [#allocation4], 256, 256, 16
    $region29: #{tpu_custom_call.1} parent=1 // pred_fallthru
      _
    // Predicated region
    $region30: #{tpu_custom_call.1} parent=1 // pred_check
      _
    $region31: #{tpu_custom_call.1} parent=1 // pred_check_branch
      %359 = sbr.rel (0) target = $region33
    $region32: #{tpu_custom_call.1} parent=1 // pred_region
      %360 = dma.done [#allocation4], 512
    $region33: #{tpu_custom_call.1} parent=1 // pred_fallthru
      _
    %361 = vsyncpa [#allocation3], 1
    %362 = vsyncpa [#allocation6], 1
    %363 = vsyncpa [#allocation4], 1

</llo_original>
